<compile_context>
chip_gen: v7x
topology: tpu7x:2x2x1
jax: 0.10.0
libtpu: 0.0.40
codegen_flags: <defaults>
</compile_context>

<pallas_src>
import jax
import jax.numpy as jnp
from jax.experimental import pallas as pl
from jax.experimental.pallas import tpu as pltpu

B, IN, OUT = 1, 10, 50
OUT_PAD = 128   # lane-dense output width (unmasked vst)
NCHAINS = 4     # independent FMA chains to break the serial VALU dependence


def linear_clamp_kernel(x_ref, w_ref, b_ref, o_ref):
    # x_ref: SMEM (IN,)          f32 scalars
    # w_ref: VMEM (IN, OUT_PAD)  f32  (transposed, zero-padded PyTorch weight)
    # b_ref: VMEM (1, OUT_PAD)   f32  (zero-padded bias row)
    # o_ref: VMEM (1, OUT_PAD)   f32
    #
    # 4 independent partial accumulators: chain 0 starts from the bias row,
    # chains 1..3 start from zero; k values are interleaved round-robin.
    accs = [b_ref[...]] + [
        jnp.zeros((1, OUT_PAD), jnp.float32) for _ in range(NCHAINS - 1)
    ]
    for k in range(IN):                                # fully unrolled
        c = k % NCHAINS
        accs[c] = accs[c] + x_ref[k] * w_ref[k:k + 1, :]   # scalar-bcast FMA
    # Pairwise tree reduction of the partial chains.
    acc = (accs[0] + accs[1]) + (accs[2] + accs[3])
    # torch.clamp_max(torch.clamp(v1, 0), 50)
    o_ref[...] = jnp.clip(acc, 0.0, 50.0)


def prepare_params(weight, bias):
    """One-time parameter prep (PyTorch layout -> padded kernel layout).

    weight: (OUT, IN); bias: (OUT,).  Returns (w_pad (IN, OUT_PAD),
    b_pad (1, OUT_PAD)), zero-padded so the wrapper's output slice is valid.
    """
    w_pad = jnp.zeros((IN, OUT_PAD), jnp.float32).at[:, :OUT].set(
        weight.astype(jnp.float32).T)
    b_pad = jnp.zeros((1, OUT_PAD), jnp.float32).at[:, :OUT].set(
        bias.astype(jnp.float32))
    return w_pad, b_pad


@jax.jit
def linear_clamp(x, w_pad, b_pad):
    """x: (B, IN) with B == 1; w_pad/b_pad from prepare_params()."""
    assert x.shape == (B, IN), "kernel is specialized for a single batch row"
    x_flat = x.reshape(IN).astype(jnp.float32)   # 1-D SMEM scalars

    y_pad = pl.pallas_call(
        linear_clamp_kernel,
        out_shape=jax.ShapeDtypeStruct((B, OUT_PAD), jnp.float32),
        in_specs=[
            pl.BlockSpec(memory_space=pltpu.MemorySpace.SMEM),  # x scalars (1-D)
            pl.BlockSpec(memory_space=pltpu.MemorySpace.VMEM),  # padded W
            pl.BlockSpec(memory_space=pltpu.MemorySpace.VMEM),  # padded bias
        ],
        out_specs=pl.BlockSpec(memory_space=pltpu.MemorySpace.VMEM),
    )(x_flat, w_pad, b_pad)

    # Drop the lane padding; padded columns are exactly 0 (0*x + 0 bias, clipped).
    return y_pad[:, :OUT]


if __name__ == "__main__":
    key = jax.random.PRNGKey(0)
    kx, kw, kb = jax.random.split(key, 3)

    # Deterministic "module parameters" (nn.Linear(10, 50), PyTorch layout).
    x1 = jax.random.normal(kx, (B, IN), dtype=jnp.float32)
    weight = jax.random.normal(kw, (OUT, IN), dtype=jnp.float32) * 0.1
    bias = jax.random.normal(kb, (OUT,), dtype=jnp.float32) * 0.1

    # One-time layout prep, outside the hot path.
    w_pad, b_pad = prepare_params(weight, bias)
    jax.block_until_ready((w_pad, b_pad))

    out = linear_clamp(x1, w_pad, b_pad)
    jax.block_until_ready(out)

    # Reference in plain JAX: clamp(x @ W^T + b, 0, 50).
    ref = jnp.clip(x1 @ weight.T + bias[None, :], 0.0, 50.0)
    assert out.shape == (B, OUT)
    assert jnp.allclose(out, ref, atol=1e-5, rtol=1e-5)

    print("KERNEL_OK")
</pallas_src>

<mosaic_0001>
module attributes {stable_mosaic.version = 11 : i64} {
  func.func @linear_clamp_kernel(%arg0: memref<10xf32, #tpu.memory_space<smem>>, %arg1: memref<10x128xf32, #tpu.memory_space<vmem>>, %arg2: memref<1x128xf32, #tpu.memory_space<vmem>>, %arg3: memref<1x128xf32, #tpu.memory_space<vmem>>) attributes {dimension_semantics = [], scalar_prefetch = 0 : i64, scratch_operands = 0 : i64, tpu.core_type = #tpu.core_type<tc>} {
    %c0 = arith.constant 0 : index
    %c0_0 = arith.constant 0 : index
    %0 = vector.load %arg2[%c0, %c0_0] : memref<1x128xf32, #tpu.memory_space<vmem>>, vector<1x128xf32>
    %cst = arith.constant 0.000000e+00 : f32
    %1 = vector.broadcast %cst : f32 to vector<1x128xf32>
    %cst_1 = arith.constant 0.000000e+00 : f32
    %2 = vector.broadcast %cst_1 : f32 to vector<1x128xf32>
    %cst_2 = arith.constant 0.000000e+00 : f32
    %3 = vector.broadcast %cst_2 : f32 to vector<1x128xf32>
    %c0_3 = arith.constant 0 : index
    %4 = memref.load %arg0[%c0_3] : memref<10xf32, #tpu.memory_space<smem>>
    %c0_4 = arith.constant 0 : index
    %c0_5 = arith.constant 0 : index
    %5 = vector.load %arg1[%c0_4, %c0_5] : memref<10x128xf32, #tpu.memory_space<vmem>>, vector<1x128xf32>
    %6 = vector.broadcast %4 : f32 to vector<1x128xf32>
    %7 = arith.mulf %6, %5 : vector<1x128xf32>
    %8 = arith.addf %0, %7 : vector<1x128xf32>
    %c1 = arith.constant 1 : index
    %9 = memref.load %arg0[%c1] : memref<10xf32, #tpu.memory_space<smem>>
    %c1_6 = arith.constant 1 : index
    %c0_7 = arith.constant 0 : index
    %10 = vector.load %arg1[%c1_6, %c0_7] : memref<10x128xf32, #tpu.memory_space<vmem>>, vector<1x128xf32>
    %11 = vector.broadcast %9 : f32 to vector<1x128xf32>
    %12 = arith.mulf %11, %10 : vector<1x128xf32>
    %13 = arith.addf %1, %12 : vector<1x128xf32>
    %c2 = arith.constant 2 : index
    %14 = memref.load %arg0[%c2] : memref<10xf32, #tpu.memory_space<smem>>
    %c2_8 = arith.constant 2 : index
    %c0_9 = arith.constant 0 : index
    %15 = vector.load %arg1[%c2_8, %c0_9] : memref<10x128xf32, #tpu.memory_space<vmem>>, vector<1x128xf32>
    %16 = vector.broadcast %14 : f32 to vector<1x128xf32>
    %17 = arith.mulf %16, %15 : vector<1x128xf32>
    %18 = arith.addf %2, %17 : vector<1x128xf32>
    %c3 = arith.constant 3 : index
    %19 = memref.load %arg0[%c3] : memref<10xf32, #tpu.memory_space<smem>>
    %c3_10 = arith.constant 3 : index
    %c0_11 = arith.constant 0 : index
    %20 = vector.load %arg1[%c3_10, %c0_11] : memref<10x128xf32, #tpu.memory_space<vmem>>, vector<1x128xf32>
    %21 = vector.broadcast %19 : f32 to vector<1x128xf32>
    %22 = arith.mulf %21, %20 : vector<1x128xf32>
    %23 = arith.addf %3, %22 : vector<1x128xf32>
    %c4 = arith.constant 4 : index
    %24 = memref.load %arg0[%c4] : memref<10xf32, #tpu.memory_space<smem>>
    %c4_12 = arith.constant 4 : index
    %c0_13 = arith.constant 0 : index
    %25 = vector.load %arg1[%c4_12, %c0_13] : memref<10x128xf32, #tpu.memory_space<vmem>>, vector<1x128xf32>
    %26 = vector.broadcast %24 : f32 to vector<1x128xf32>
    %27 = arith.mulf %26, %25 : vector<1x128xf32>
    %28 = arith.addf %8, %27 : vector<1x128xf32>
    %c5 = arith.constant 5 : index
    %29 = memref.load %arg0[%c5] : memref<10xf32, #tpu.memory_space<smem>>
    %c5_14 = arith.constant 5 : index
    %c0_15 = arith.constant 0 : index
    %30 = vector.load %arg1[%c5_14, %c0_15] : memref<10x128xf32, #tpu.memory_space<vmem>>, vector<1x128xf32>
    %31 = vector.broadcast %29 : f32 to vector<1x128xf32>
    %32 = arith.mulf %31, %30 : vector<1x128xf32>
    %33 = arith.addf %13, %32 : vector<1x128xf32>
    %c6 = arith.constant 6 : index
    %34 = memref.load %arg0[%c6] : memref<10xf32, #tpu.memory_space<smem>>
    %c6_16 = arith.constant 6 : index
    %c0_17 = arith.constant 0 : index
    %35 = vector.load %arg1[%c6_16, %c0_17] : memref<10x128xf32, #tpu.memory_space<vmem>>, vector<1x128xf32>
    %36 = vector.broadcast %34 : f32 to vector<1x128xf32>
    %37 = arith.mulf %36, %35 : vector<1x128xf32>
    %38 = arith.addf %18, %37 : vector<1x128xf32>
    %c7 = arith.constant 7 : index
    %39 = memref.load %arg0[%c7] : memref<10xf32, #tpu.memory_space<smem>>
    %c7_18 = arith.constant 7 : index
    %c0_19 = arith.constant 0 : index
    %40 = vector.load %arg1[%c7_18, %c0_19] : memref<10x128xf32, #tpu.memory_space<vmem>>, vector<1x128xf32>
    %41 = vector.broadcast %39 : f32 to vector<1x128xf32>
    %42 = arith.mulf %41, %40 : vector<1x128xf32>
    %43 = arith.addf %23, %42 : vector<1x128xf32>
    %c8 = arith.constant 8 : index
    %44 = memref.load %arg0[%c8] : memref<10xf32, #tpu.memory_space<smem>>
    %c8_20 = arith.constant 8 : index
    %c0_21 = arith.constant 0 : index
    %45 = vector.load %arg1[%c8_20, %c0_21] : memref<10x128xf32, #tpu.memory_space<vmem>>, vector<1x128xf32>
    %46 = vector.broadcast %44 : f32 to vector<1x128xf32>
    %47 = arith.mulf %46, %45 : vector<1x128xf32>
    %48 = arith.addf %28, %47 : vector<1x128xf32>
    %c9 = arith.constant 9 : index
    %49 = memref.load %arg0[%c9] : memref<10xf32, #tpu.memory_space<smem>>
    %c9_22 = arith.constant 9 : index
    %c0_23 = arith.constant 0 : index
    %50 = vector.load %arg1[%c9_22, %c0_23] : memref<10x128xf32, #tpu.memory_space<vmem>>, vector<1x128xf32>
    %51 = vector.broadcast %49 : f32 to vector<1x128xf32>
    %52 = arith.mulf %51, %50 : vector<1x128xf32>
    %53 = arith.addf %33, %52 : vector<1x128xf32>
    %54 = arith.addf %48, %53 : vector<1x128xf32>
    %55 = arith.addf %38, %43 : vector<1x128xf32>
    %56 = arith.addf %54, %55 : vector<1x128xf32>
    %cst_24 = arith.constant 0.000000e+00 : f32
    %cst_25 = arith.constant 5.000000e+01 : f32
    %57 = vector.broadcast %cst_24 : f32 to vector<1x128xf32>
    %58 = arith.maximumf %57, %56 : vector<1x128xf32>
    %59 = vector.broadcast %cst_25 : f32 to vector<1x128xf32>
    %60 = arith.minimumf %59, %58 : vector<1x128xf32>
    %c0_26 = arith.constant 0 : index
    %c0_27 = arith.constant 0 : index
    %61 = vector.load %arg3[%c0_26, %c0_27] : memref<1x128xf32, #tpu.memory_space<vmem>>, vector<1x128xf32>
    tpu.vector_store %arg3[%c0_26, %c0_27], %60 {strides = array<i32>} : memref<1x128xf32, #tpu.memory_space<vmem>>, vector<1x128xf32>,
    return
  }
}

</mosaic_0001>

<llo_original>
// kernel: linear_clamp.1
$region0: #{linear_clamp.1}
  #allocation0 [shape = 'u32[]', space=smem, size = 0x4, offset = 0x4, fixed_abs, tag = 'smem constant byte address 0x4 - core index']
  #allocation1 [shape = 'u32[144,128]{1,0:T(1,128)}', space=vmem, size = 0x12000, scoped, tag = 'internal scratch']
  %s0 = inlined_call_operand.vmem [shape: f32[10], index: 0, kind: input, shape index: {}]
  %s1 = inlined_call_operand.hbm [shape: f32[10,128], index: 1, kind: input, shape index: {}]
  %s2 = inlined_call_operand.vmem [shape: f32[1,128], index: 2, kind: input, shape index: {}]
  %s3 = inlined_call_operand.hbm [shape: f32[1,128], index: 3, kind: output, shape index: {}]
  %s4 = sld [smem:[#allocation0]]
  $region30: #{linear_clamp.1} parent=0
    _
  %s6 = ssub.s32 1, %s4
  %s7 = scalar_select 0, %s6, %s4
  $region1: #{linear_clamp.1} parent=0
    #allocation2 [shape = 'u8[512]{0}', space=smem, size = 0x200, scoped, tag = 'input window, operand 0, single buffered']
    #allocation3 [shape = 's32[1]{0}', space=sflag, size = 0x4, scoped, tag = 'scoped memory for linear_clamp.1']
    #allocation4 [shape = 's32[1]{0}', space=sflag, size = 0x4, scoped, tag = 'scoped memory for linear_clamp.1']
    #allocation5 [shape = 's32[1]{0}', space=sflag, size = 0x4, scoped, tag = 'scoped memory for linear_clamp.1']
    #allocation6 [shape = 'u8[8192]{0}', space=vmem, size = 0x2000, scoped, tag = 'input window, operand 1, single buffered']
    #allocation7 [shape = 'u8[512]{0}', space=vmem, size = 0x400, scoped, tag = 'output window, operand 0, single buffered']
    %8 = vsyncpa [#allocation5], 0
    %9 = vsyncpa [#allocation3], 0
    %10 = vsyncpa [#allocation4], 0
    // Predicated region
    $region2: #{linear_clamp.1} parent=1 // pred_check
      _
    $region3: #{linear_clamp.1} parent=1 // pred_check_branch
      %12 = sbr.rel (0) target = $region5
    $region4: #{linear_clamp.1} parent=1 // pred_region
      %s14 = ssub.s32 16, 16
      %15 = vsyncadd [#allocation5], %s14
      %s17 = sshll.u32 %s0, 4
      %s18 = int_to_ptr.vmem [resolvable:$true] %s17
      %20 = dma.vmem_to_smem %s18, 16, [#allocation2], [#allocation5]
    $region5: #{linear_clamp.1} parent=1 // pred_fallthru
      _
    // Predicated region
    $region6: #{linear_clamp.1} parent=1 // pred_check
      _
    $region7: #{linear_clamp.1} parent=1 // pred_check_branch
      %22 = sbr.rel (0) target = $region9
    $region8: #{linear_clamp.1} parent=1 // pred_region
      %s24 = ssub.s32 256, 256
      %25 = vsyncadd [#allocation3], %s24
      %s26 = sshll.u32 [#allocation6], 4
      %s27 = int_to_ptr.vmem [resolvable:$true] %s26
      %32 = dma.hbm_to_vmem [thread:$0]  %s1, 256, %s27, [#allocation3], 128, 128, 8
    $region9: #{linear_clamp.1} parent=1 // pred_fallthru
      _
    // Predicated region
    $region10: #{linear_clamp.1} parent=1 // pred_check
      _
    $region11: #{linear_clamp.1} parent=1 // pred_check_branch
      %34 = sbr.rel (0) target = $region13
    $region12: #{linear_clamp.1} parent=1 // pred_region
      _
    $region13: #{linear_clamp.1} parent=1 // pred_fallthru
      _
    // Predicated region
    $region14: #{linear_clamp.1} parent=1 // pred_check
      _
    $region15: #{linear_clamp.1} parent=1 // pred_check_branch
      %36 = sbr.rel (0) target = $region17
    $region16: #{linear_clamp.1} parent=1 // pred_region
      %37 = dma.done [#allocation5], 16
    $region17: #{linear_clamp.1} parent=1 // pred_fallthru
      _
    // Predicated region
    $region18: #{linear_clamp.1} parent=1 // pred_check
      _
    $region19: #{linear_clamp.1} parent=1 // pred_check_branch
      %39 = sbr.rel (0) target = $region21
    $region20: #{linear_clamp.1} parent=1 // pred_region
      %40 = dma.done [#allocation3], 256
    $region21: #{linear_clamp.1} parent=1 // pred_fallthru
      _
    %41 = sfence
    %v42 = vld [vmem:[%s2] sm:$0x1]
    %s43 = sld [smem:[#allocation2]]
    %v44 = vld [vmem:[#allocation6] sm:$0x1]
    %v45 = vstv %s43
    %v46 = vmul.f32 %v45, %v44
    %v47 = vadd.f32 %v42, %v46
    %s48 = sld [smem:[#allocation2 + $0x1]]
    %v49 = vld [vmem:[#allocation6 + $0x1] sm:$0x1]
    %v50 = vstv %s48
    %v51 = vmul.f32 %v50, %v49
    %v52 = vadd.f32 %v51, 0.0
    %s53 = sld [smem:[#allocation2 + $0x2]]
    %v54 = vld [vmem:[#allocation6 + $0x2] sm:$0x1]
    %v55 = vstv %s53
    %v56 = vmul.f32 %v55, %v54
    %v57 = vadd.f32 %v56, 0.0
    %s58 = sld [smem:[#allocation2 + $0x3]]
    %v59 = vld [vmem:[#allocation6 + $0x3] sm:$0x1]
    %v60 = vstv %s58
    %v61 = vmul.f32 %v60, %v59
    %v62 = vadd.f32 %v61, 0.0
    %s63 = sld [smem:[#allocation2 + $0x4]]
    %v64 = vld [vmem:[#allocation6 + $0x4] sm:$0x1]
    %v65 = vstv %s63
    %v66 = vmul.f32 %v65, %v64
    %v67 = vadd.f32 %v47, %v66
    %s68 = sld [smem:[#allocation2 + $0x5]]
    %v69 = vld [vmem:[#allocation6 + $0x5] sm:$0x1]
    %v70 = vstv %s68
    %v71 = vmul.f32 %v70, %v69
    %v72 = vadd.f32 %v52, %v71
    %s73 = sld [smem:[#allocation2 + $0x6]]
    %v74 = vld [vmem:[#allocation6 + $0x6] sm:$0x1]
    %v75 = vstv %s73
    %v76 = vmul.f32 %v75, %v74
    %v77 = vadd.f32 %v57, %v76
    %s78 = sld [smem:[#allocation2 + $0x7]]
    %v79 = vld [vmem:[#allocation6 + $0x7] sm:$0x1]
    %v80 = vstv %s78
    %v81 = vmul.f32 %v80, %v79
    %v82 = vadd.f32 %v62, %v81
    %s83 = sld [smem:[#allocation2 + $0x8]]
    %v84 = vld [vmem:[#allocation6 + $0x8] sm:$0x1]
    %v85 = vstv %s83
    %v86 = vmul.f32 %v85, %v84
    %v87 = vadd.f32 %v67, %v86
    %s88 = sld [smem:[#allocation2 + $0x9]]
    %v89 = vld [vmem:[#allocation6 + $0x9] sm:$0x1]
    %v90 = vstv %s88
    %v91 = vmul.f32 %v90, %v89
    %v92 = vadd.f32 %v72, %v91
    %v93 = vadd.f32 %v87, %v92
    %v94 = vadd.f32 %v77, %v82
    %v95 = vadd.f32 %v93, %v94
    %v96 = vmax.f32 %v95, 0.0
    %v97 = vmin.f32 %v96, 50.0
    %98 = vst [vmem:[#allocation7] sm:$0x1] %v97
    // Predicated region
    $region22: #{linear_clamp.1} parent=1 // pred_check
      _
    $region23: #{linear_clamp.1} parent=1 // pred_check_branch
      %100 = sbr.rel (0) target = $region25
    $region24: #{linear_clamp.1} parent=1 // pred_region
      %s102 = ssub.s32 16, 16
      %103 = vsyncadd [#allocation4], %s102
      %s105 = sshll.u32 [#allocation7], 4
      %s106 = int_to_ptr.vmem [resolvable:$true] %s105
      %108 = dma.vmem_to_hbm [thread:$0]  %s106, 16, %s3, [#allocation4]
    $region25: #{linear_clamp.1} parent=1 // pred_fallthru
      _
    // Predicated region
    $region26: #{linear_clamp.1} parent=1 // pred_check
      _
    $region27: #{linear_clamp.1} parent=1 // pred_check_branch
      %110 = sbr.rel (0) target = $region29
    $region28: #{linear_clamp.1} parent=1 // pred_region
      %111 = dma.done [#allocation4], 16
    $region29: #{linear_clamp.1} parent=1 // pred_fallthru
      _
    %112 = vsyncpa [#allocation3], 1
    %113 = vsyncpa [#allocation4], 1
    %114 = vsyncpa [#allocation5], 1

</llo_original>
